<compile_context>
chip_gen: v7x
topology: tpu7x:2x2x1
jax: 0.10.0
libtpu: 0.0.40
codegen_flags: <defaults>
</compile_context>

<pallas_src>
import functools

import jax
import jax.numpy as jnp
from jax.experimental import pallas as pl
from jax.experimental.pallas import tpu as pltpu

CONST_N = 15
CONST_OUTPUT_BIT = 8
CONST_SIGMOID_FACTOR = 1.0 / 2 ** (CONST_OUTPUT_BIT - 1)

# float32-carrier constants (match the torch float32 semantics)
_MAX_I32_F = float(2.0 ** 31 - 1.0)                        # == 2**31 once in f32
_SIG_SHIFT = float(2.0 ** -(31 - CONST_OUTPUT_BIT + 1))    # * 2**-24, exact


def _round_up(v, m):
    return ((v + m - 1) // m) * m


def _pow2_unguarded(k):
    """Exact 2**k for integer-valued float k in [0, 127] (VPU integer ops only)."""
    return pltpu.bitcast((k.astype(jnp.int32) + 127) << 23, jnp.float32)


def _pow2_guarded(k):
    """Exact 2**k for integer-valued float k >= 0; inf for k >= 128 (matches
    float32 overflow behaviour of the torch code)."""
    p = pltpu.bitcast((k.astype(jnp.int32) + 127) << 23, jnp.float32)
    return jnp.where(k >= 128.0, jnp.float32(jnp.inf), p)


def _gelu_int_kernel(params_ref, x_ref, o_ref, *, apply_rescale: bool):
    # derived scalars precomputed in the wrapper (SMEM)
    ratio = params_ref[0]      # scale_last / scale_x
    lower = params_ref[1]
    upper = params_ref[2]
    x0 = params_ref[3]         # floor(-1 / (scale_x * 1.702))   (negative)
    n_x0 = params_ref[4]       # CONST_N * x0
    inv_x0 = params_ref[5]     # 1 / x0  (exact scalar divide, done once)

    x = x_ref[...]

    if apply_rescale:          # static branch == torch's Python `if scale1 != scale2`
        pre_x = jnp.clip(jnp.round(x * ratio), lower, upper)
    else:
        pre_x = x

    # Row max over the logical last dim (Mosaic masks padding lanes when H<128
    # or H % 128 != 0; block last dim == full H so the logical shape is exact).
    x_max = jnp.max(pre_x, axis=-1, keepdims=True)

    # ---- wide path: argument <= 0 and clamped >= N*x0, so q in [0, N] ----
    # (no 2**k overflow guard; floor-division via precomputed 1/x0 + fixup,
    #  which reproduces floor(x/x0) exactly for any realistic quantizer scale)
    xw = pre_x - x_max
    xw = xw + jnp.floor(xw * 0.5) - jnp.floor(xw * 0.0625)
    xw = jnp.maximum(xw, n_x0)
    q0 = jnp.floor(xw * inv_x0)
    r0 = xw - x0 * q0
    # floor-division invariant for x0 < 0: remainder must lie in (x0, 0]
    adj = jnp.where(r0 > 0.0, 1.0, 0.0) - jnp.where(r0 <= x0, 1.0, 0.0)
    q = q0 - adj
    r = r0 + adj * x0
    exp_w = jnp.floor((r * 0.5 - x0) * _pow2_unguarded(jnp.float32(CONST_N) - q))
    exp_w = jnp.maximum(exp_w, 0.0)

    # ---- narrow path: (rows, 1) column -> negligible cost; keep the exact
    # divide and the k>=128 guard (q can go negative here for x_max < 0) ----
    xn = -x_max
    xn = xn + jnp.floor(xn * 0.5) - jnp.floor(xn * 0.0625)
    xn = jnp.maximum(xn, n_x0)
    qn = jnp.floor(xn / x0)
    rn = xn - x0 * qn
    exp_n = jnp.floor((rn * 0.5 - x0) * _pow2_guarded(jnp.float32(CONST_N) - qn))
    exp_n = jnp.maximum(exp_n, 0.0)

    exp_sum = jnp.minimum(exp_w + exp_n, _MAX_I32_F)
    # floor() of the correctly-rounded f32 quotient is semantically required
    # (approx reciprocal + Newton can be off by 1 ulp and flip the floor), so
    # this divide stays exact.
    factor = jnp.floor(_MAX_I32_F / exp_sum)
    sigmoid_int = jnp.floor(exp_w * factor * _SIG_SHIFT)
    o_ref[...] = pre_x * sigmoid_int


def _choose_row_tile(n_rows, h):
    """Row-tile choice: ~2 MiB per in/out buffer (DMA efficiency plateaus well
    before that), >=4 grid steps when rows allow (v7x dual-TC balance), row
    count a multiple of 8 (or the full dim for tiny inputs)."""
    if n_rows <= 8:
        return n_rows                          # block dim == full dim (legal)
    row_bytes = 4 * _round_up(h, 128)          # lane-padded VMEM footprint
    tile = (2 * 1024 * 1024) // row_bytes
    tile = max(8, min(512, (tile // 8) * 8))
    quarter = max(8, _round_up(pl.cdiv(n_rows, 4), 8))
    tile = min(tile, quarter)
    return min(tile, _round_up(n_rows, 8))


def gelu_int_infer_pallas(x_int, scale_last_layer, scale_x, lower, upper):
    """x_int: (..., H) float32 carrying integer values. Returns same shape."""
    orig_shape = x_int.shape
    H = orig_shape[-1]
    x2d = jnp.asarray(x_int, jnp.float32).reshape(-1, H)
    R = x2d.shape[0]

    scale_last = jnp.asarray(scale_last_layer, jnp.float32).reshape(())
    scale_x = jnp.asarray(scale_x, jnp.float32).reshape(())

    # Static equal-scale decision (mirrors the torch module's Python `if`).
    try:
        apply_rescale = bool(scale_last != scale_x)
    except jax.errors.ConcretizationTypeError:
        # TODO(synk): traced scales — torch decides this in Python; fall back
        # to always rescaling (identical for integer x within [lower, upper]).
        apply_rescale = True

    scaling_factor_sig = scale_x * jnp.float32(1.702)
    x0_int = jnp.floor(jnp.float32(-1.0) / scaling_factor_sig)
    params = jnp.stack([
        scale_last / scale_x,                       # ratio (divide done once)
        jnp.asarray(lower, jnp.float32),
        jnp.asarray(upper, jnp.float32),
        x0_int,
        jnp.float32(CONST_N) * x0_int,
        jnp.float32(1.0) / x0_int,                  # 1/x0 (exact, done once)
    ])

    row_tile = _choose_row_tile(R, H)
    grid_rows = pl.cdiv(R, row_tile)

    # VMEM accounting: double-buffered in+out (2*2) + ~3 full-tile temporaries,
    # capped well under v7x's 64 MiB per-TensorCore VMEM.
    tile_bytes = 4 * row_tile * _round_up(H, 128)
    vmem_limit = int(min(48 * 1024 * 1024,
                         max(32 * 1024 * 1024, 7 * tile_bytes + (8 << 20))))

    cost = pl.CostEstimate(flops=55 * R * H,
                           transcendentals=1 * R * H,
                           bytes_accessed=8 * R * H)

    # TODO(synk): for H far below 128 (e.g. H=32) a sublane-major / packed-row
    # layout with a segmented max would avoid the ~128/H lane-padding waste.

    kernel = functools.partial(_gelu_int_kernel, apply_rescale=apply_rescale)
    out = pl.pallas_call(
        kernel,
        out_shape=jax.ShapeDtypeStruct((R, H), jnp.float32),
        grid=(grid_rows,),
        in_specs=[
            pl.BlockSpec(memory_space=pltpu.MemorySpace.SMEM),   # scalar params
            pl.BlockSpec((row_tile, H), lambda i: (i, 0)),       # x tile (full H)
        ],
        out_specs=pl.BlockSpec((row_tile, H), lambda i: (i, 0)),
        compiler_params=pltpu.CompilerParams(
            dimension_semantics=("parallel",),
            vmem_limit_bytes=vmem_limit),
        cost_estimate=cost,
    )(params, x2d)

    return out.reshape(orig_shape)


class OIntInferGeluPallas:
    """Mimics the two-phase behaviour of the torch OIntInferGelu module."""

    def __init__(self, quantizer_scale, bit_lower_bound, bit_upper_bound,
                 input_shape, output_shape):
        self.int_infer_flag = False
        self.scale_x = jnp.float32(quantizer_scale)
        self.scale_y = self.scale_x * jnp.float32(CONST_SIGMOID_FACTOR)
        self.scale_last_layer = None
        self.input_shape = tuple(input_shape)
        self.output_shape = tuple(output_shape)
        self.x_bit_lower_bound = float(bit_lower_bound)
        self.x_bit_upper_bound = float(bit_upper_bound)

    def __call__(self, x):
        if self.int_infer_flag:
            return gelu_int_infer_pallas(
                x, self.scale_last_layer, self.scale_x,
                self.x_bit_lower_bound, self.x_bit_upper_bound)
        # scale-propagation pass (plain-JAX glue, no hot compute)
        assert x.shape == self.input_shape
        self.scale_last_layer = x.reshape(-1)[0]
        self.int_infer_flag = True
        return jnp.ones(self.output_shape, jnp.float32) * self.scale_y


if __name__ == "__main__":
    # small shapes: batch=2, seq=8, hidden=32 (reduction over the last dim)
    B, S, H = 2, 8, 32
    input_shape = (B, S, H)
    output_shape = (B, S, H)

    quantizer_scale = 0.05
    bit_lower_bound = -128.0
    bit_upper_bound = 127.0
    prev_layer_scale = 0.04

    mod = OIntInferGeluPallas(quantizer_scale, bit_lower_bound, bit_upper_bound,
                              input_shape, output_shape)

    # phase 1: scale pass
    scale_tensor = jnp.ones(input_shape, jnp.float32) * prev_layer_scale
    jax.block_until_ready(mod(scale_tensor))

    # phase 2: integer inference pass through the Pallas kernel
    key = jax.random.PRNGKey(0)
    k1, k2 = jax.random.split(key)
    x_int = jax.random.randint(k1, input_shape, -128, 128).astype(jnp.float32)
    y = mod(x_int)
    jax.block_until_ready(y)

    # ---- plain-JAX reference (same float32 carrier / math as the torch code;
    # 2**k is built exactly so the integer floors are unambiguous) ----
    def ref_pow2(k):
        k_i = k.astype(jnp.int32)
        p = jax.lax.bitcast_convert_type((k_i + 127) << 23, jnp.float32)
        return jnp.where(k >= 128.0, jnp.float32(jnp.inf), p)

    def ref_int_exp_shift(xi, sf):
        xi = xi + jnp.floor(xi / 2.0) - jnp.floor(xi / 16.0)
        x0 = jnp.floor(-1.0 / sf)
        xi = jnp.maximum(xi, CONST_N * x0)
        q = jnp.floor(xi / x0)
        r = xi - x0 * q
        e = r / 2.0 - x0
        return jnp.maximum(jnp.floor(e * ref_pow2(CONST_N - q)), 0.0)

    def ref(x, s1, s2, rescale=True):
        s1 = jnp.float32(s1)
        s2 = jnp.float32(s2)
        if rescale:
            pre = jnp.clip(jnp.round(x * s1 / s2), bit_lower_bound, bit_upper_bound)
        else:
            pre = x
        sf = s2 * jnp.float32(1.702)
        xmax = jnp.max(pre, axis=-1, keepdims=True)
        e = ref_int_exp_shift(pre - xmax, sf)
        em = ref_int_exp_shift(-xmax, sf)
        s = jnp.minimum(e + em, _MAX_I32_F)
        fac = jnp.floor(_MAX_I32_F / s)
        sig = jnp.floor(e * fac / 2.0 ** (31 - CONST_OUTPUT_BIT + 1))
        return pre * sig

    assert y.shape == output_shape
    assert jnp.allclose(y, ref(x_int, prev_layer_scale, quantizer_scale)), \
        "mismatch vs. reference (main)"

    # partial last row-block (R=15) + sub-128 lane tail (H=32)
    x_odd = jax.random.randint(k2, (3, 5, H), -128, 128).astype(jnp.float32)
    y_odd = gelu_int_infer_pallas(x_odd, prev_layer_scale, quantizer_scale,
                                  bit_lower_bound, bit_upper_bound)
    jax.block_until_ready(y_odd)
    assert jnp.allclose(y_odd, ref(x_odd, prev_layer_scale, quantizer_scale)), \
        "mismatch vs. reference (partial block)"

    # equal-scale static branch (div_shift pass-through, no rescale/clip)
    y_eq = gelu_int_infer_pallas(x_int, quantizer_scale, quantizer_scale,
                                 bit_lower_bound, bit_upper_bound)
    jax.block_until_ready(y_eq)
    assert jnp.allclose(y_eq, ref(x_int, quantizer_scale, quantizer_scale,
                                  rescale=False)), \
        "mismatch vs. reference (equal scale)"

    print("KERNEL_OK")
</pallas_src>

<mosaic_0001>
module attributes {stable_mosaic.version = 11 : i64} {
  func.func @_gelu_int_kernel(%arg0: i32, %arg1: memref<6xf32, #tpu.memory_space<smem>>, %arg2: memref<8x32xf32, #tpu.memory_space<vmem>>, %arg3: memref<8x32xf32, #tpu.memory_space<vmem>>) attributes {dimension_semantics = [#tpu.dimension_semantics<parallel>], iteration_bounds = array<i64: 2>, scalar_prefetch = 0 : i64, scratch_operands = 0 : i64, tpu.core_type = #tpu.core_type<tc>, window_params = [{transform_indices = @transform_0, window_bounds = array<i64: 6>}, {transform_indices = @transform_1, window_bounds = array<i64: 8, 32>}, {transform_indices = @transform_2, window_bounds = array<i64: 8, 32>}]} {
    %c0 = arith.constant 0 : index
    %0 = memref.load %arg1[%c0] : memref<6xf32, #tpu.memory_space<smem>>
    %c1 = arith.constant 1 : index
    %1 = memref.load %arg1[%c1] : memref<6xf32, #tpu.memory_space<smem>>
    %c2 = arith.constant 2 : index
    %2 = memref.load %arg1[%c2] : memref<6xf32, #tpu.memory_space<smem>>
    %c3 = arith.constant 3 : index
    %3 = memref.load %arg1[%c3] : memref<6xf32, #tpu.memory_space<smem>>
    %c4 = arith.constant 4 : index
    %4 = memref.load %arg1[%c4] : memref<6xf32, #tpu.memory_space<smem>>
    %c5 = arith.constant 5 : index
    %5 = memref.load %arg1[%c5] : memref<6xf32, #tpu.memory_space<smem>>
    %c0_0 = arith.constant 0 : index
    %c0_1 = arith.constant 0 : index
    %6 = vector.load %arg2[%c0_0, %c0_1] : memref<8x32xf32, #tpu.memory_space<vmem>>, vector<8x32xf32>
    %7 = vector.broadcast %0 : f32 to vector<8x32xf32>
    %8 = arith.mulf %6, %7 : vector<8x32xf32>
    %9 = math.roundeven %8 : vector<8x32xf32>
    %10 = vector.broadcast %1 : f32 to vector<8x32xf32>
    %11 = arith.maximumf %10, %9 : vector<8x32xf32>
    %12 = vector.broadcast %2 : f32 to vector<8x32xf32>
    %13 = arith.minimumf %12, %11 : vector<8x32xf32>
    %cst = arith.constant dense<0xFF800000> : vector<8xf32>
    %14 = vector.multi_reduction <maximumf>, %13, %cst [1] : vector<8x32xf32> to vector<8xf32>
    %15 = vector.shape_cast %14 : vector<8xf32> to vector<8x1xf32>
    %16 = vector.broadcast %15 : vector<8x1xf32> to vector<8x32xf32>
    %17 = arith.subf %13, %16 : vector<8x32xf32>
    %cst_2 = arith.constant 5.000000e-01 : f32
    %18 = vector.broadcast %cst_2 : f32 to vector<8x32xf32>
    %19 = arith.mulf %17, %18 : vector<8x32xf32>
    %20 = math.floor %19 : vector<8x32xf32>
    %21 = arith.addf %17, %20 : vector<8x32xf32>
    %cst_3 = arith.constant 6.250000e-02 : f32
    %22 = vector.broadcast %cst_3 : f32 to vector<8x32xf32>
    %23 = arith.mulf %17, %22 : vector<8x32xf32>
    %24 = math.floor %23 : vector<8x32xf32>
    %25 = arith.subf %21, %24 : vector<8x32xf32>
    %26 = vector.broadcast %4 : f32 to vector<8x32xf32>
    %27 = arith.maximumf %25, %26 : vector<8x32xf32>
    %28 = vector.broadcast %5 : f32 to vector<8x32xf32>
    %29 = arith.mulf %27, %28 : vector<8x32xf32>
    %30 = math.floor %29 : vector<8x32xf32>
    %31 = vector.broadcast %3 : f32 to vector<8x32xf32>
    %32 = arith.mulf %31, %30 : vector<8x32xf32>
    %33 = arith.subf %27, %32 : vector<8x32xf32>
    %cst_4 = arith.constant 0.000000e+00 : f32
    %34 = vector.broadcast %cst_4 : f32 to vector<8x32xf32>
    %35 = arith.cmpf ogt, %33, %34 : vector<8x32xf32>
    %cst_5 = arith.constant 1.000000e+00 : f32
    %cst_6 = arith.constant 0.000000e+00 : f32
    %36 = vector.broadcast %cst_5 : f32 to vector<8x32xf32>
    %37 = vector.broadcast %cst_6 : f32 to vector<8x32xf32>
    %38 = arith.select %35, %36, %37 : vector<8x32xi1>, vector<8x32xf32>
    %39 = vector.broadcast %3 : f32 to vector<8x32xf32>
    %40 = arith.cmpf ole, %33, %39 : vector<8x32xf32>
    %cst_7 = arith.constant 1.000000e+00 : f32
    %cst_8 = arith.constant 0.000000e+00 : f32
    %41 = vector.broadcast %cst_7 : f32 to vector<8x32xf32>
    %42 = vector.broadcast %cst_8 : f32 to vector<8x32xf32>
    %43 = arith.select %40, %41, %42 : vector<8x32xi1>, vector<8x32xf32>
    %44 = arith.subf %38, %43 : vector<8x32xf32>
    %45 = arith.subf %30, %44 : vector<8x32xf32>
    %46 = vector.broadcast %3 : f32 to vector<8x32xf32>
    %47 = arith.mulf %44, %46 : vector<8x32xf32>
    %48 = arith.addf %33, %47 : vector<8x32xf32>
    %cst_9 = arith.constant 5.000000e-01 : f32
    %49 = vector.broadcast %cst_9 : f32 to vector<8x32xf32>
    %50 = arith.mulf %48, %49 : vector<8x32xf32>
    %51 = vector.broadcast %3 : f32 to vector<8x32xf32>
    %52 = arith.subf %50, %51 : vector<8x32xf32>
    %cst_10 = arith.constant 1.500000e+01 : f32
    %53 = vector.broadcast %cst_10 : f32 to vector<8x32xf32>
    %54 = arith.subf %53, %45 : vector<8x32xf32>
    %55 = arith.fptosi %54 : vector<8x32xf32> to vector<8x32xi32>
    %c127_i32 = arith.constant 127 : i32
    %56 = vector.broadcast %c127_i32 : i32 to vector<8x32xi32>
    %57 = arith.addi %55, %56 : vector<8x32xi32>
    %c23_i32 = arith.constant 23 : i32
    %58 = vector.broadcast %c23_i32 : i32 to vector<8x32xi32>
    %59 = arith.shli %57, %58 : vector<8x32xi32>
    %60 = tpu.bitcast %59 : vector<8x32xi32> -> vector<8x32xf32>
    %61 = arith.mulf %52, %60 : vector<8x32xf32>
    %62 = math.floor %61 : vector<8x32xf32>
    %cst_11 = arith.constant 0.000000e+00 : f32
    %63 = vector.broadcast %cst_11 : f32 to vector<8x32xf32>
    %64 = arith.maximumf %62, %63 : vector<8x32xf32>
    %cst_12 = arith.constant 0.000000e+00 : f32
    %65 = vector.broadcast %cst_12 : f32 to vector<8x1xf32>
    %66 = arith.subf %65, %15 : vector<8x1xf32>
    %cst_13 = arith.constant 5.000000e-01 : f32
    %67 = vector.broadcast %cst_13 : f32 to vector<8x1xf32>
    %68 = arith.mulf %66, %67 : vector<8x1xf32>
    %69 = math.floor %68 : vector<8x1xf32>
    %70 = arith.addf %66, %69 : vector<8x1xf32>
    %cst_14 = arith.constant 6.250000e-02 : f32
    %71 = vector.broadcast %cst_14 : f32 to vector<8x1xf32>
    %72 = arith.mulf %66, %71 : vector<8x1xf32>
    %73 = math.floor %72 : vector<8x1xf32>
    %74 = arith.subf %70, %73 : vector<8x1xf32>
    %75 = vector.broadcast %4 : f32 to vector<8x1xf32>
    %76 = arith.maximumf %74, %75 : vector<8x1xf32>
    %77 = vector.broadcast %3 : f32 to vector<8x1xf32>
    %78 = arith.divf %76, %77 : vector<8x1xf32>
    %79 = math.floor %78 : vector<8x1xf32>
    %80 = vector.broadcast %3 : f32 to vector<8x1xf32>
    %81 = arith.mulf %80, %79 : vector<8x1xf32>
    %82 = arith.subf %76, %81 : vector<8x1xf32>
    %cst_15 = arith.constant 5.000000e-01 : f32
    %83 = vector.broadcast %cst_15 : f32 to vector<8x1xf32>
    %84 = arith.mulf %82, %83 : vector<8x1xf32>
    %85 = vector.broadcast %3 : f32 to vector<8x1xf32>
    %86 = arith.subf %84, %85 : vector<8x1xf32>
    %cst_16 = arith.constant 1.500000e+01 : f32
    %87 = vector.broadcast %cst_16 : f32 to vector<8x1xf32>
    %88 = arith.subf %87, %79 : vector<8x1xf32>
    %89 = arith.fptosi %88 : vector<8x1xf32> to vector<8x1xi32>
    %c127_i32_17 = arith.constant 127 : i32
    %90 = vector.broadcast %c127_i32_17 : i32 to vector<8x1xi32>
    %91 = arith.addi %89, %90 : vector<8x1xi32>
    %c23_i32_18 = arith.constant 23 : i32
    %92 = vector.broadcast %c23_i32_18 : i32 to vector<8x1xi32>
    %93 = arith.shli %91, %92 : vector<8x1xi32>
    %94 = tpu.bitcast %93 : vector<8x1xi32> -> vector<8x1xf32>
    %cst_19 = arith.constant 1.280000e+02 : f32
    %95 = vector.broadcast %cst_19 : f32 to vector<8x1xf32>
    %96 = arith.cmpf oge, %88, %95 : vector<8x1xf32>
    %cst_20 = arith.constant 0x7F800000 : f32
    %97 = vector.broadcast %cst_20 : f32 to vector<8x1xf32>
    %98 = arith.select %96, %97, %94 : vector<8x1xi1>, vector<8x1xf32>
    %99 = arith.mulf %86, %98 : vector<8x1xf32>
    %100 = math.floor %99 : vector<8x1xf32>
    %cst_21 = arith.constant 0.000000e+00 : f32
    %101 = vector.broadcast %cst_21 : f32 to vector<8x1xf32>
    %102 = arith.maximumf %100, %101 : vector<8x1xf32>
    %103 = vector.broadcast %102 : vector<8x1xf32> to vector<8x32xf32>
    %104 = arith.addf %64, %103 : vector<8x32xf32>
    %cst_22 = arith.constant 2.14748365E+9 : f32
    %105 = vector.broadcast %cst_22 : f32 to vector<8x32xf32>
    %106 = arith.minimumf %104, %105 : vector<8x32xf32>
    %cst_23 = arith.constant 2.14748365E+9 : f32
    %107 = vector.broadcast %cst_23 : f32 to vector<8x32xf32>
    %108 = arith.divf %107, %106 : vector<8x32xf32>
    %109 = math.floor %108 : vector<8x32xf32>
    %110 = arith.mulf %64, %109 : vector<8x32xf32>
    %cst_24 = arith.constant 5.96046448E-8 : f32
    %111 = vector.broadcast %cst_24 : f32 to vector<8x32xf32>
    %112 = arith.mulf %110, %111 : vector<8x32xf32>
    %113 = math.floor %112 : vector<8x32xf32>
    %114 = arith.mulf %13, %113 : vector<8x32xf32>
    %c0_25 = arith.constant 0 : index
    %c0_26 = arith.constant 0 : index
    %115 = vector.load %arg3[%c0_25, %c0_26] : memref<8x32xf32, #tpu.memory_space<vmem>>, vector<8x32xf32>
    tpu.vector_store %arg3[%c0_25, %c0_26], %114 {strides = array<i32>} : memref<8x32xf32, #tpu.memory_space<vmem>>, vector<8x32xf32>,
    return
  }
  func.func @transform_0(%arg0: i32) -> i32 {
    %c0_i32 = arith.constant 0 : i32
    %c0_i32_0 = arith.constant 0 : i32
    return %c0_i32 : i32
  }
  func.func @transform_1(%arg0: i32) -> (i32, i32) {
    %c0_i32 = arith.constant 0 : i32
    %c0_i32_0 = arith.constant 0 : i32
    return %arg0, %c0_i32 : i32, i32
  }
  func.func @transform_2(%arg0: i32) -> (i32, i32) {
    %c0_i32 = arith.constant 0 : i32
    %c0_i32_0 = arith.constant 0 : i32
    return %arg0, %c0_i32 : i32, i32
  }
}

</mosaic_0001>

<llo_original>
// kernel: tpu_custom_call.1
$region0: #{tpu_custom_call.1}
  #allocation0 [shape = 'u32[]', space=smem, size = 0x4, offset = 0x4, fixed_abs, tag = 'smem constant byte address 0x4 - core index']
  #allocation1 [shape = 'u32[144,128]{1,0:T(1,128)}', space=vmem, size = 0x12000, scoped, tag = 'internal scratch']
  %s0 = inlined_call_operand.hbm [shape: f32[6], index: 0, kind: input, shape index: {}]
  %s1 = inlined_call_operand.hbm [shape: f32[16,32], index: 1, kind: input, shape index: {}]
  %s2 = inlined_call_operand.hbm [shape: f32[16,32], index: 2, kind: output, shape index: {}]
  %s3 = sld [smem:[#allocation0]]
  $region49: #{tpu_custom_call.1} parent=0
    _
  %s5 = ssub.s32 1, %s3
  %s6 = scalar_select 0, %s5, %s3
  $region1: #{tpu_custom_call.1} parent=0
    #allocation2 [shape = 'u8[512]{0}', space=smem, size = 0x200, scoped, tag = 'input window, operand 0, single buffered']
    #allocation3 [shape = 's32[2]{0}', space=sflag, size = 0x8, scoped, tag = 'scoped memory for tpu_custom_call.1']
    #allocation4 [shape = 's32[2]{0}', space=sflag, size = 0x8, scoped, tag = 'scoped memory for tpu_custom_call.1']
    #allocation5 [shape = 's32[2]{0}', space=sflag, size = 0x8, scoped, tag = 'scoped memory for tpu_custom_call.1']
    #allocation6 [shape = 'u8[8192]{0}', space=vmem, size = 0x2000, scoped, tag = 'input window, operand 1']
    #allocation7 [shape = 'u8[8192]{0}', space=vmem, size = 0x2000, scoped, tag = 'output window, operand 0']
    %7 = vsyncpa [#allocation5], 0
    %8 = vsyncpa [#allocation3], 0
    %s9 = scalar_lea.sflag [#allocation3], 1
    %10 = vsyncpa %s9, 0
    %11 = vsyncpa [#allocation4], 0
    %s12 = scalar_lea.sflag [#allocation4], 1
    %13 = vsyncpa %s12, 0
    loop: start=0, step=1, limit=4
    $region2: #{tpu_custom_call.1} parent=1 // loop_pre_header
      _
    $region3: #{tpu_custom_call.1} parent=1 // loop_header
      %s15 = sphi 0, %s19
      %p16 = scmp.ge.s32.totalorder %s15, 4
      %s23 = sphi 0, %s23
      %s25 = sphi 0, %s23
      %s26 = sphi 0, %s25
      %s40 = sphi 0, %s26
      %s46 = sphi 0, %s48
      %s49 = sphi 0, %s46
      %s50 = sphi 0, %s49
      %s66 = sphi 0, %s50
      %s72 = sphi 0, %s74
      %s75 = sphi 0, %s72
      %s76 = sphi 0, %s75
      %s92 = sphi 0, %s76
    $region4: #{tpu_custom_call.1} parent=1 // loop_header_branch
      %18 = sbr.rel (%p16) target = $region8
    $region5: #{tpu_custom_call.1} parent=1 // loop_body
      %s20 = ssub.s32 %s15, 1
      %s21 = ssub.s32 %s15, 2
      %s22 = sadd.s32 %s15, 1
      %s24 = sadd.s32 %s23, 1
      %p27 = scmp.eq.s32.totalorder %s15, 1
      %p28 = scmp.ne.s32.totalorder %s23, %s25
      %p29 = scmp.eq.s32.totalorder %s15, 0
      %p30 = por %p28, %p29
      %p31 = scmp.ne.s32.totalorder %s23, %s25
      %p32 = scmp.eq.s32.totalorder %s20, 1
      %p33 = por %p31, %p32
      %p34 = scmp.ne.s32.totalorder %s25, %s26
      %p35 = scmp.eq.s32.totalorder %s20, 0
      %p36 = por %p34, %p35
      %p37 = scmp.ne.s32.totalorder %s25, %s26
      %p38 = scmp.eq.s32.totalorder %s21, 1
      %p39 = por %p37, %p38
      %p41 = scmp.ne.s32.totalorder %s26, %s40
      %p42 = scmp.eq.s32.totalorder %s21, 0
      %p43 = por %p41, %p42
      %s44 = ssub.s32 %s15, %s22
      %p45 = scmp.eq.s32.totalorder %s44, 0
      %s47 = sadd.s32 %s46, 1
      %s48 = scalar_select %p45, %s46, %s47
      %p51 = pneg %p45
      %p52 = scmp.eq.s32.totalorder %s15, 1
      %p53 = por %p51, %p52
      %p54 = scmp.ne.s32.totalorder %s46, %s49
      %p55 = scmp.eq.s32.totalorder %s15, 0
      %p56 = por %p54, %p55
      %p57 = scmp.ne.s32.totalorder %s46, %s49
      %p58 = scmp.eq.s32.totalorder %s20, 1
      %p59 = por %p57, %p58
      %p60 = scmp.ne.s32.totalorder %s49, %s50
      %p61 = scmp.eq.s32.totalorder %s20, 0
      %p62 = por %p60, %p61
      %p63 = scmp.ne.s32.totalorder %s49, %s50
      %p64 = scmp.eq.s32.totalorder %s21, 1
      %p65 = por %p63, %p64
      %p67 = scmp.ne.s32.totalorder %s50, %s66
      %p68 = scmp.eq.s32.totalorder %s21, 0
      %p69 = por %p67, %p68
      %s70 = ssub.s32 %s15, %s22
      %p71 = scmp.eq.s32.totalorder %s70, 0
      %s73 = sadd.s32 %s72, 1
      %s74 = scalar_select %p71, %s72, %s73
      %p77 = pneg %p71
      %p78 = scmp.eq.s32.totalorder %s15, 1
      %p79 = por %p77, %p78
      %p80 = scmp.ne.s32.totalorder %s72, %s75
      %p81 = scmp.eq.s32.totalorder %s15, 0
      %p82 = por %p80, %p81
      %p83 = scmp.ne.s32.totalorder %s72, %s75
      %p84 = scmp.eq.s32.totalorder %s20, 1
      %p85 = por %p83, %p84
      %p86 = scmp.ne.s32.totalorder %s75, %s76
      %p87 = scmp.eq.s32.totalorder %s20, 0
      %p88 = por %p86, %p87
      %p89 = scmp.ne.s32.totalorder %s75, %s76
      %p90 = scmp.eq.s32.totalorder %s21, 1
      %p91 = por %p89, %p90
      %p93 = scmp.ne.s32.totalorder %s76, %s92
      %p94 = scmp.eq.s32.totalorder %s21, 0
      %p95 = por %p93, %p94
      %p96 = scmp.le.s32.totalorder 1, %s15
      %p97 = scmp.lt.s32.totalorder %s15, 3
      %p98 = pnand %p96, %p97
      %p99 = pneg %p98
      // Predicated region
      $region9: #{tpu_custom_call.1} parent=5 // pred_check
        _
      $region10: #{tpu_custom_call.1} parent=5 // pred_check_branch
        %101 = sbr.rel (%p98) target = $region12
      $region11: #{tpu_custom_call.1} parent=5 // pred_region
        %s102 = ssub.s32 %s15, 1
        // Predicated region
        $region13: #{tpu_custom_call.1} parent=11 // pred_check
          %p103 = pneg %p36
        $region14: #{tpu_custom_call.1} parent=11 // pred_check_branch
          %105 = sbr.rel (%p103) target = $region16
        $region15: #{tpu_custom_call.1} parent=11 // pred_region
          %s107 = ssub.s32 16, 16
          %108 = vsyncadd [#allocation5], %s107
          %111 = dma.hbm_to_smem %s0, 16, [#allocation2], [#allocation5]
        $region16: #{tpu_custom_call.1} parent=11 // pred_fallthru
          _
      $region12: #{tpu_custom_call.1} parent=5 // pred_fallthru
        _
      %p112 = scmp.lt.s32.totalorder %s15, 2
      // Predicated region
      $region17: #{tpu_custom_call.1} parent=5 // pred_check
        %p113 = pneg %p112
      $region18: #{tpu_custom_call.1} parent=5 // pred_check_branch
        %115 = sbr.rel (%p113) target = $region20
      $region19: #{tpu_custom_call.1} parent=5 // pred_region
        // Predicated region
        $region21: #{tpu_custom_call.1} parent=19 // pred_check
          %p116 = pneg %p56
        $region22: #{tpu_custom_call.1} parent=19 // pred_check_branch
          %118 = sbr.rel (%p116) target = $region24
        $region23: #{tpu_custom_call.1} parent=19 // pred_region
          %s119 = sand.u32 %s46, 1
          %s120 = scalar_lea.sflag [#allocation3], %s119
          %s121 = sand.u32 %s46, 1
          %s122 = smul.addr %s121, 8
          %s123 = scalar_lea.vmem [#allocation6], %s122
          %s125 = ssub.s32 128, 128
          %126 = vsyncadd %s120, %s125
          %s127 = smul.addr %s15, 128
          %s128 = scalar_lea.hbm %s1, %s127
          %s130 = sshll.u32 %s123, 4
          %s131 = int_to_ptr.vmem [resolvable:$true] %s130
          %133 = dma.hbm_to_vmem [thread:$0]  %s128, 128, %s131, %s120
        $region24: #{tpu_custom_call.1} parent=19 // pred_fallthru
          _
      $region20: #{tpu_custom_call.1} parent=5 // pred_fallthru
        _
      %p134 = scmp.le.s32.totalorder 1, %s15
      %p135 = scmp.lt.s32.totalorder %s15, 3
      %p136 = pnand %p134, %p135
      %p137 = pneg %p136
      // Predicated region
      $region25: #{tpu_custom_call.1} parent=5 // pred_check
        _
      $region26: #{tpu_custom_call.1} parent=5 // pred_check_branch
        %139 = sbr.rel (%p136) target = $region28
      $region27: #{tpu_custom_call.1} parent=5 // pred_region
        %s140 = ssub.s32 %s15, 1
        // Predicated region
        $region29: #{tpu_custom_call.1} parent=27 // pred_check
          %p141 = pneg %p36
        $region30: #{tpu_custom_call.1} parent=27 // pred_check_branch
          %143 = sbr.rel (%p141) target = $region32
        $region31: #{tpu_custom_call.1} parent=27 // pred_region
          %144 = dma.done [#allocation5], 16
        $region32: #{tpu_custom_call.1} parent=27 // pred_fallthru
          _
        %s145 = sand.u32 %s49, 1
        %s146 = scalar_lea.sflag [#allocation3], %s145
        %s147 = sand.u32 %s49, 1
        %s148 = smul.addr %s147, 8
        %s149 = scalar_lea.vmem [#allocation6], %s148
        // Predicated region
        $region33: #{tpu_custom_call.1} parent=27 // pred_check
          %p150 = pneg %p62
        $region34: #{tpu_custom_call.1} parent=27 // pred_check_branch
          %152 = sbr.rel (%p150) target = $region36
        $region35: #{tpu_custom_call.1} parent=27 // pred_region
          %153 = dma.done %s146, 128
        $region36: #{tpu_custom_call.1} parent=27 // pred_fallthru
          _
        %154 = sfence
        %p155 = pneg %p36
        %p156 = pneg %p33
        %s157 = sand.u32 %s49, 1
        %s158 = scalar_lea.sflag [#allocation3], %s157
        %s159 = sand.u32 %s49, 1
        %s160 = smul.addr %s159, 8
        %s161 = scalar_lea.vmem [#allocation6], %s160
        %p162 = pneg %p62
        %p163 = pneg %p59
        %p164 = pneg %p88
        %p165 = pneg %p85
        %s166 = sand.u32 %s75, 1
        %s167 = scalar_lea.sflag [#allocation4], %s166
        %s168 = sand.u32 %s75, 1
        %s169 = smul.addr %s168, 8
        %s170 = scalar_lea.vmem [#allocation7], %s169
        %s171 = sld [smem:[#allocation2]]
        %s172 = sld [smem:[#allocation2 + $0x1]]
        %s173 = sld [smem:[#allocation2 + $0x2]]
        %s174 = sld [smem:[#allocation2 + $0x3]]
        %s175 = sld [smem:[#allocation2 + $0x4]]
        %s176 = sld [smem:[#allocation2 + $0x5]]
        %v177 = vld [vmem:[%s149] sm:$0xff]
        %v178 = vstv %s171
        %v179 = vmul.f32 %v177, %v178
        %v180 = vround.ne.pseudo %v179
        %v181 = vstv %s172
        %v182 = vmax.f32 %v181, %v180
        %v183 = vstv %s173
        %v184 = vmin.f32 %v183, %v182
        %vm185 = vcmask 261120
        %v186 = vsel %vm185, %v184, -inf
        %187 = vmax.xlane.f32.xlu0 %v186
        %v188 = vpop.xlane.xlu0 %187
        %v189 = vsub.f32 %v184, %v188
        %v190 = vmul.f32 %v189, 0.5
        %v191 = vfloor.f32 %v190
        %v192 = vadd.f32 %v189, %v191
        %v193 = vmul.f32 %v189, 0.0625
        %v194 = vfloor.f32 %v193
        %v195 = vsub.f32 %v192, %v194
        %v196 = vstv %s175
        %v197 = vmax.f32 %v195, %v196
        %v198 = vstv %s176
        %v199 = vmul.f32 %v197, %v198
        %v200 = vfloor.f32 %v199
        %v201 = vstv %s174
        %v202 = vmul.f32 %v201, %v200
        %v203 = vsub.f32 %v197, %v202
        %vm204 = vcmp.gt.f32.partialorder %v203, 0.0
        %v205 = vsel %vm204, 1.0, 0.0
        %vm206 = vcmp.le.f32.partialorder %v203, %v201
        %v207 = vsel %vm206, 1.0, 0.0
        %v208 = vsub.f32 %v205, %v207
        %v209 = vsub.f32 %v200, %v208
        %v210 = vmul.f32 %v208, %v201
        %v211 = vadd.f32 %v203, %v210
        %v212 = vmul.f32 %v211, 0.5
        %v213 = vsub.f32 %v212, %v201
        %v214 = vsub.f32 15.0, %v209
        %v215 = vcvt.f32.s32.to.zero.pseudo %v214
        %v216 = vadd.s32 %v215, 127
        %v217 = vshll.u32 %v216, 23
        %v219 = vmul.f32 %v213, %v217
        %v220 = vfloor.f32 %v219
        %v221 = vmax.f32 %v220, 0.0
        %v222 = vsub.f32 0.0, %v188
        %v223 = vmul.f32 %v222, 0.5
        %v224 = vfloor.f32 %v223
        %v225 = vadd.f32 %v222, %v224
        %v226 = vmul.f32 %v222, 0.0625
        %v227 = vfloor.f32 %v226
        %v228 = vsub.f32 %v225, %v227
        %v229 = vmax.f32 %v228, %v196
        %v230 = vrcp.pop %v201
        %v231 = vmul.f32 %v229, %v230
        %v232 = vfloor.f32 %v231
        %v233 = vmul.f32 %v201, %v232
        %v234 = vsub.f32 %v229, %v233
        %v235 = vmul.f32 %v234, 0.5
        %v236 = vsub.f32 %v235, %v201
        %v237 = vsub.f32 15.0, %v232
        %v238 = vcvt.f32.s32.to.zero.pseudo %v237
        %v239 = vadd.s32 %v238, 127
        %v240 = vshll.u32 %v239, 23
        %vm242 = vcmp.ge.f32.partialorder %v237, 128.0
        %v243 = vsel %vm242, inf, %v240
        %v244 = vmul.f32 %v236, %v243
        %v245 = vfloor.f32 %v244
        %v246 = vmax.f32 %v245, 0.0
        %v247 = vadd.f32 %v221, %v246
        %v248 = vmin.f32 %v247, 2.1474836e+09
        %v249 = vrcp.pop %v248
        %v250 = vmul.f32 2.1474836e+09, %v249
        %v251 = vfloor.f32 %v250
        %v252 = vmul.f32 %v221, %v251
        %v253 = vmul.f32 %v252, 5.9604645e-08
        %v254 = vfloor.f32 %v253
        %v255 = vmul.f32 %v184, %v254
        %256 = vst.msk [vmem:[%s170] sm:$0xff] %vm185, %v255
        %s257 = sand.u32 %s75, 1
        %s258 = scalar_lea.sflag [#allocation4], %s257
        %s259 = sand.u32 %s75, 1
        %s260 = smul.addr %s259, 8
        %s261 = scalar_lea.vmem [#allocation7], %s260
        // Predicated region
        $region37: #{tpu_custom_call.1} parent=27 // pred_check
          %p262 = pneg %p85
        $region38: #{tpu_custom_call.1} parent=27 // pred_check_branch
          %264 = sbr.rel (%p262) target = $region40
        $region39: #{tpu_custom_call.1} parent=27 // pred_region
          %s266 = ssub.s32 128, 128
          %267 = vsyncadd %s258, %s266
          %s268 = smul.addr %s20, 128
          %s269 = scalar_lea.hbm %s2, %s268
          %s271 = sshll.u32 %s261, 4
          %s272 = int_to_ptr.vmem [resolvable:$true] %s271
          %274 = dma.vmem_to_hbm [thread:$0]  %s272, 128, %s269, %s258
        $region40: #{tpu_custom_call.1} parent=27 // pred_fallthru
          _
      $region28: #{tpu_custom_call.1} parent=5 // pred_fallthru
        _
      %p275 = scmp.le.s32.totalorder 2, %s15
      // Predicated region
      $region41: #{tpu_custom_call.1} parent=5 // pred_check
        %p276 = pneg %p275
      $region42: #{tpu_custom_call.1} parent=5 // pred_check_branch
        %278 = sbr.rel (%p276) target = $region44
      $region43: #{tpu_custom_call.1} parent=5 // pred_region
        %s279 = ssub.s32 %s15, 2
        // Predicated region
        $region45: #{tpu_custom_call.1} parent=43 // pred_check
          %p280 = pneg %p91
        $region46: #{tpu_custom_call.1} parent=43 // pred_check_branch
          %282 = sbr.rel (%p280) target = $region48
        $region47: #{tpu_custom_call.1} parent=43 // pred_region
          %s283 = sand.u32 %s76, 1
          %s284 = scalar_lea.sflag [#allocation4], %s283
          %s285 = sand.u32 %s76, 1
          %s286 = smul.addr %s285, 8
          %s287 = scalar_lea.vmem [#allocation7], %s286
          %288 = dma.done %s284, 128
        $region48: #{tpu_custom_call.1} parent=43 // pred_fallthru
          _
      $region44: #{tpu_custom_call.1} parent=5 // pred_fallthru
        _
    $region6: #{tpu_custom_call.1} parent=1 // loop_footer
      %s19 = sadd.s32 1, %s15
    $region7: #{tpu_custom_call.1} parent=1 // loop_footer_branch
      %14 = sbr.rel target = $region3
    $region8: #{tpu_custom_call.1} parent=1 // loop_exit
      _
    %289 = vsyncpa [#allocation3], 1
    %s290 = scalar_lea.sflag [#allocation3], 1
    %291 = vsyncpa %s290, 1
    %292 = vsyncpa [#allocation4], 1
    %s293 = scalar_lea.sflag [#allocation4], 1
    %294 = vsyncpa %s293, 1
    %295 = vsyncpa [#allocation5], 1
    %s296 = scalar_lea.sflag [#allocation5], 1
    %297 = vsyncpa %s296, 1

</llo_original>
